<compile_context>
chip_gen: v7x
topology: tpu7x:2x2x1
jax: 0.10.0
libtpu: 0.0.40
codegen_flags: <defaults>
</compile_context>

<pallas_src>
import functools

import jax
import jax.numpy as jnp
from jax.experimental import pallas as pl
from jax.experimental.pallas import tpu as pltpu


# Dtypes the kernel streams natively (cast to f32 happens on the VPU, in-kernel).
# TODO(synk): float16 codes still take a wrapper-side cast; Mosaic f16 elementwise
# support varies by TPU generation.
_KERNEL_IN_DTYPES = (
    jnp.float32, jnp.bfloat16,
    jnp.int8, jnp.int16, jnp.int32,
    jnp.uint8, jnp.uint16, jnp.uint32,
)
_MIN_PALLAS_ELEMS = 2048          # below this, launch/reshape overhead dominates
_TARGET_BLOCK_BYTES = 12 << 20    # combined (input + output) bytes per grid step
_VMEM_LIMIT_BYTES = 48 << 20      # explicit: > v5e's 16 MiB scoped default,
                                  # < v7x's 64 MiB physical VMEM


def _round_up(x, m):
    return -(-x // m) * m


def _dequantize_kernel(y_ref, o_ref, *, scale, bias, abs_max):
    y = y_ref[...]
    if y.dtype != jnp.float32:
        y = y.astype(jnp.float32)          # in-kernel cast: hidden under DMA
    x = y * scale + bias                   # offset folded into bias (single FMA)
    o_ref[...] = jnp.clip(x, -abs_max, abs_max).astype(o_ref.dtype)


def _dimension_semantics(grid_size):
    """Plain 'parallel' everywhere; CORE_PARALLEL on v7x to split the grid
    across both TensorCores (they share the 3.2 TB/s HBM)."""
    try:
        kind = jax.devices()[0].device_kind.lower()
    except Exception:  # pragma: no cover - defensive
        kind = ""
    if grid_size > 1 and ("v7" in kind or "tpu7" in kind):
        return (pltpu.CORE_PARALLEL,)
    return ("parallel",)


class InverseUniformQuantization:
    """JAX/Pallas port of diffsptk.InverseUniformQuantization.

    Parameters
    ----------
    abs_max : float > 0
    n_bit : int >= 1
    quantizer : 'mid-rise' | 'mid-tread' (or 0 | 1)
    out_dtype : optional output dtype override (e.g. jnp.bfloat16) for integer
        code inputs; default keeps f32/bf16 inputs and promotes everything else
        to f32.
    """

    def __init__(self, abs_max=1, n_bit=8, quantizer="mid-rise", out_dtype=None):
        assert 0 < abs_max
        assert 1 <= n_bit
        self.abs_max = float(abs_max)
        if quantizer == 0 or quantizer == "mid-rise":
            self.level = int(2 ** n_bit)
            self.quantizer = "mid-rise"
        elif quantizer == 1 or quantizer == "mid-tread":
            self.level = int(2 ** n_bit) - 1
            self.quantizer = "mid-tread"
        else:
            raise ValueError(f"quantizer {quantizer} is not supported")

        if self.quantizer == "mid-rise":
            self.offset = self.level / 2 - 0.5
        else:  # mid-tread
            self.offset = float((self.level - 1) // 2)
        self.scale = 2.0 * self.abs_max / self.level
        self.bias = -self.offset * self.scale   # x = y * scale + bias
        self.out_dtype = out_dtype

    # ------------------------------------------------------------------ #

    def _pallas_common(self, kernel, n, in_dtype, out_dtype):
        in_bytes = n * jnp.dtype(in_dtype).itemsize
        out_bytes = n * jnp.dtype(out_dtype).itemsize
        cost = pl.CostEstimate(
            flops=4 * n, transcendentals=0, bytes_accessed=in_bytes + out_bytes
        )
        return cost

    def __call__(self, y):
        orig_shape = y.shape
        in_dtype = y.dtype
        if self.out_dtype is not None:
            out_dtype = jnp.dtype(self.out_dtype)
        elif in_dtype == jnp.float32 or in_dtype == jnp.bfloat16:
            out_dtype = jnp.dtype(in_dtype)
        else:
            out_dtype = jnp.dtype(jnp.float32)
        n = y.size

        if n == 0:
            return jnp.zeros(orig_shape, out_dtype)

        # Tiny-input fallback: a fused XLA elementwise op beats kernel launch.
        if n < _MIN_PALLAS_ELEMS:
            x = y.astype(jnp.float32) * self.scale + self.bias
            return jnp.clip(x, -self.abs_max, self.abs_max).astype(out_dtype)

        flat = jnp.ravel(y)
        if not any(flat.dtype == d for d in _KERNEL_IN_DTYPES):
            flat = flat.astype(jnp.float32)   # rare exotic dtypes only

        in_itemsize = jnp.dtype(flat.dtype).itemsize
        out_itemsize = jnp.dtype(out_dtype).itemsize
        bytes_per_elem = in_itemsize + out_itemsize

        kernel = functools.partial(
            _dequantize_kernel,
            scale=self.scale,
            bias=self.bias,
            abs_max=self.abs_max,
        )
        cost = self._pallas_common(kernel, n, flat.dtype, out_dtype)

        if n % 128 == 0:
            # ---- Fast path: lane-dense 2-D slab, no pad/slice copies. ----
            cols = 128
            for c in (2048, 1024, 512, 256, 128):
                if n % c == 0:
                    cols = c
                    break
            rows = n // cols
            mat = flat.reshape(rows, cols)

            # Block rows: ~_TARGET_BLOCK_BYTES combined in+out bytes per step,
            # multiple of 32 so 8/16/32-bit tiles all stay (32/16/8,128) aligned.
            br = _round_up(
                max(1, _TARGET_BLOCK_BYTES // (cols * bytes_per_elem)), 32
            )
            br = min(br, _round_up(rows, 32))
            grid = (-(-rows // br),)

            out = pl.pallas_call(
                kernel,
                out_shape=jax.ShapeDtypeStruct((rows, cols), out_dtype),
                grid_spec=pltpu.PrefetchScalarGridSpec(
                    num_scalar_prefetch=0,
                    grid=grid,
                    in_specs=[pl.BlockSpec((br, cols), lambda i: (i, 0))],
                    out_specs=pl.BlockSpec((br, cols), lambda i: (i, 0)),
                ),
                compiler_params=pltpu.CompilerParams(
                    dimension_semantics=_dimension_semantics(grid[0]),
                    vmem_limit_bytes=_VMEM_LIMIT_BYTES,
                ),
                cost_estimate=cost,
            )(mat)
            return out.reshape(orig_shape)

        # ---- n not a multiple of 128: 1-D path, Pallas masks the ragged ----
        # ---- final block.  No jnp.pad, no trailing slice copy.          ----
        blk = _round_up(max(1024, _TARGET_BLOCK_BYTES // bytes_per_elem), 1024)
        blk = min(blk, _round_up(n, 1024))
        grid = (pl.cdiv(n, blk),)

        out = pl.pallas_call(
            kernel,
            out_shape=jax.ShapeDtypeStruct((n,), out_dtype),
            grid_spec=pltpu.PrefetchScalarGridSpec(
                num_scalar_prefetch=0,
                grid=grid,
                in_specs=[pl.BlockSpec((blk,), lambda i: (i,))],
                out_specs=pl.BlockSpec((blk,), lambda i: (i,)),
            ),
            compiler_params=pltpu.CompilerParams(
                dimension_semantics=_dimension_semantics(grid[0]),
                vmem_limit_bytes=_VMEM_LIMIT_BYTES,
            ),
            cost_estimate=cost,
        )(flat)
        return out.reshape(orig_shape)


def _reference(y, abs_max, level, quantizer):
    y = y.astype(jnp.float32)
    if quantizer == "mid-rise":
        y = y - (level / 2 - 0.5)
    else:
        y = y - (level - 1) // 2
    x = y * (2.0 * abs_max / level)
    return jnp.clip(x, -abs_max, abs_max)


if __name__ == "__main__":
    key = jax.random.PRNGKey(0)
    k1, k2, k3 = jax.random.split(key, 3)

    # 1) 8-bit mid-rise codes, NCHW-like shape, f32 codes -> 2-D slab path.
    x = jax.random.randint(k1, (2, 4, 16, 16), minval=0, maxval=256).astype(
        jnp.float32
    )
    dequantize = InverseUniformQuantization(abs_max=1.0, n_bit=8,
                                            quantizer="mid-rise")
    out = dequantize(x)
    jax.block_until_ready(out)
    ref = _reference(x, dequantize.abs_max, dequantize.level,
                     dequantize.quantizer)
    assert out.shape == x.shape and out.dtype == x.dtype
    assert jnp.allclose(out, ref, atol=1e-5), "mismatch vs reference (f32)"

    # 2) Narrow-dtype streaming: 4-bit mid-rise codes stored as int8.
    codes = jax.random.randint(k2, (8, 8, 64), minval=0, maxval=16).astype(
        jnp.int8
    )
    dq_i8 = InverseUniformQuantization(abs_max=2.0, n_bit=4,
                                       quantizer="mid-rise")
    out_i8 = dq_i8(codes)
    jax.block_until_ready(out_i8)
    ref_i8 = _reference(codes, dq_i8.abs_max, dq_i8.level, dq_i8.quantizer)
    assert out_i8.shape == codes.shape and out_i8.dtype == jnp.float32
    assert jnp.allclose(out_i8, ref_i8, atol=1e-5), "mismatch vs reference (i8)"

    # 2b) out_dtype knob: int8 codes -> bf16 output (smaller output stream).
    dq_bf16 = InverseUniformQuantization(abs_max=2.0, n_bit=4,
                                         quantizer="mid-rise",
                                         out_dtype=jnp.bfloat16)
    out_bf16 = dq_bf16(codes)
    jax.block_until_ready(out_bf16)
    assert out_bf16.dtype == jnp.bfloat16
    assert jnp.allclose(out_bf16.astype(jnp.float32), ref_i8, atol=2e-2), \
        "mismatch vs reference (bf16 out)"

    # 3) Size NOT divisible by 128 -> 1-D masked-ragged-block path (no pad).
    x_rag = jax.random.randint(k3, (3, 7, 130), minval=0, maxval=256).astype(
        jnp.float32
    )
    out_rag = dequantize(x_rag)
    jax.block_until_ready(out_rag)
    ref_rag = _reference(x_rag, dequantize.abs_max, dequantize.level,
                         dequantize.quantizer)
    assert out_rag.shape == x_rag.shape and out_rag.dtype == x_rag.dtype
    assert jnp.allclose(out_rag, ref_rag, atol=1e-5), "mismatch (ragged 1-D)"

    # 4) Mid-tread sanity check (tiny input -> fused XLA fallback path).
    dq_mt = InverseUniformQuantization(abs_max=4.0, n_bit=2,
                                       quantizer="mid-tread")
    y2 = jnp.arange(-1, 5, dtype=jnp.float32)
    out2 = dq_mt(y2)
    jax.block_until_ready(out2)
    ref2 = _reference(y2, dq_mt.abs_max, dq_mt.level, dq_mt.quantizer)
    assert jnp.allclose(out2, ref2, atol=1e-6), "mid-tread mismatch"

    print("KERNEL_OK")
</pallas_src>

<mosaic_0001>
module attributes {stable_mosaic.version = 11 : i64} {
  func.func @_dequantize_kernel(%arg0: i32, %arg1: memref<32x2048xf32, #tpu.memory_space<vmem>>, %arg2: memref<32x2048xf32, #tpu.memory_space<vmem>>) attributes {dimension_semantics = [#tpu.dimension_semantics<parallel>], iteration_bounds = array<i64: 1>, scalar_prefetch = 0 : i64, scratch_operands = 0 : i64, tpu.core_type = #tpu.core_type<tc>, window_params = [{transform_indices = @transform_0, window_bounds = array<i64: 32, 2048>}, {transform_indices = @transform_1, window_bounds = array<i64: 32, 2048>}]} {
    %c0 = arith.constant 0 : index
    %c0_0 = arith.constant 0 : index
    %0 = vector.load %arg1[%c0, %c0_0] : memref<32x2048xf32, #tpu.memory_space<vmem>>, vector<32x2048xf32>
    %cst = arith.constant 7.812500e-03 : f32
    %1 = vector.broadcast %cst : f32 to vector<32x2048xf32>
    %2 = arith.mulf %0, %1 : vector<32x2048xf32>
    %cst_1 = arith.constant -0.99609375 : f32
    %3 = vector.broadcast %cst_1 : f32 to vector<32x2048xf32>
    %4 = arith.addf %2, %3 : vector<32x2048xf32>
    %cst_2 = arith.constant -1.000000e+00 : f32
    %cst_3 = arith.constant 1.000000e+00 : f32
    %5 = vector.broadcast %cst_2 : f32 to vector<32x2048xf32>
    %6 = arith.maximumf %5, %4 : vector<32x2048xf32>
    %7 = vector.broadcast %cst_3 : f32 to vector<32x2048xf32>
    %8 = arith.minimumf %7, %6 : vector<32x2048xf32>
    %c0_4 = arith.constant 0 : index
    %c0_5 = arith.constant 0 : index
    %9 = vector.load %arg2[%c0_4, %c0_5] : memref<32x2048xf32, #tpu.memory_space<vmem>>, vector<32x2048xf32>
    tpu.vector_store %arg2[%c0_4, %c0_5], %8 {strides = array<i32>} : memref<32x2048xf32, #tpu.memory_space<vmem>>, vector<32x2048xf32>,
    return
  }
  func.func @transform_0(%arg0: i32) -> (i32, i32) {
    %c0_i32 = arith.constant 0 : i32
    %c0_i32_0 = arith.constant 0 : i32
    return %arg0, %c0_i32 : i32, i32
  }
  func.func @transform_1(%arg0: i32) -> (i32, i32) {
    %c0_i32 = arith.constant 0 : i32
    %c0_i32_0 = arith.constant 0 : i32
    return %arg0, %c0_i32 : i32, i32
  }
}

</mosaic_0001>

<llo_original>
// kernel: tpu_custom_call.1
$region0: #{tpu_custom_call.1}
  #allocation0 [shape = 'u32[]', space=smem, size = 0x4, offset = 0x4, fixed_abs, tag = 'smem constant byte address 0x4 - core index']
  #allocation1 [shape = 'u32[144,128]{1,0:T(1,128)}', space=vmem, size = 0x12000, scoped, tag = 'internal scratch']
  %s0 = inlined_call_operand.hbm [shape: f32[1,2048], index: 0, kind: input, shape index: {}]
  %s1 = inlined_call_operand.hbm [shape: f32[1,2048], index: 1, kind: output, shape index: {}]
  %s2 = sld [smem:[#allocation0]]
  $region18: #{tpu_custom_call.1} parent=0
    _
  %s4 = ssub.s32 1, %s2
  %s5 = scalar_select 0, %s4, %s2
  $region1: #{tpu_custom_call.1} parent=0
    #allocation2 [shape = 'u8[262144]{0}', space=vmem, size = 0x40000, scoped, tag = 'input window, operand 0, single buffered']
    #allocation3 [shape = 's32[1]{0}', space=sflag, size = 0x4, scoped, tag = 'scoped memory for tpu_custom_call.1']
    #allocation4 [shape = 's32[1]{0}', space=sflag, size = 0x4, scoped, tag = 'scoped memory for tpu_custom_call.1']
    #allocation5 [shape = 'u8[262144]{0}', space=vmem, size = 0x40000, scoped, tag = 'output window, operand 0, single buffered']
    %6 = vsyncpa [#allocation3], 0
    %7 = vsyncpa [#allocation4], 0
    // Predicated region
    $region2: #{tpu_custom_call.1} parent=1 // pred_check
      _
    $region3: #{tpu_custom_call.1} parent=1 // pred_check_branch
      %9 = sbr.rel (0) target = $region5
    $region4: #{tpu_custom_call.1} parent=1 // pred_region
      %s11 = ssub.s32 8192, 256
      %12 = vsyncadd [#allocation3], %s11
      %s13 = sshll.u32 [#allocation2], 4
      %s14 = int_to_ptr.vmem [resolvable:$true] %s13
      %19 = dma.hbm_to_vmem [thread:$0]  %s0, 256, %s14, [#allocation3], 256, 256, 16
    $region5: #{tpu_custom_call.1} parent=1 // pred_fallthru
      _
    // Predicated region
    $region6: #{tpu_custom_call.1} parent=1 // pred_check
      _
    $region7: #{tpu_custom_call.1} parent=1 // pred_check_branch
      %21 = sbr.rel (0) target = $region9
    $region8: #{tpu_custom_call.1} parent=1 // pred_region
      %22 = dma.done [#allocation3], 8192
    $region9: #{tpu_custom_call.1} parent=1 // pred_fallthru
      _
    %v23 = vld [vmem:[#allocation2] sm:$0xff]
    %v24 = vld [vmem:[#allocation2 + $0x8] sm:$0xff]
    %v25 = vld [vmem:[#allocation2 + $0x10] sm:$0xff]
    %v26 = vld [vmem:[#allocation2 + $0x18] sm:$0xff]
    %v27 = vld [vmem:[#allocation2 + $0x20] sm:$0xff]
    %v28 = vld [vmem:[#allocation2 + $0x28] sm:$0xff]
    %v29 = vld [vmem:[#allocation2 + $0x30] sm:$0xff]
    %v30 = vld [vmem:[#allocation2 + $0x38] sm:$0xff]
    %v31 = vld [vmem:[#allocation2 + $0x40] sm:$0xff]
    %v32 = vld [vmem:[#allocation2 + $0x48] sm:$0xff]
    %v33 = vld [vmem:[#allocation2 + $0x50] sm:$0xff]
    %v34 = vld [vmem:[#allocation2 + $0x58] sm:$0xff]
    %v35 = vld [vmem:[#allocation2 + $0x60] sm:$0xff]
    %v36 = vld [vmem:[#allocation2 + $0x68] sm:$0xff]
    %v37 = vld [vmem:[#allocation2 + $0x70] sm:$0xff]
    %v38 = vld [vmem:[#allocation2 + $0x78] sm:$0xff]
    %v39 = vld [vmem:[#allocation2 + $0x80] sm:$0xff]
    %v40 = vld [vmem:[#allocation2 + $0x88] sm:$0xff]
    %v41 = vld [vmem:[#allocation2 + $0x90] sm:$0xff]
    %v42 = vld [vmem:[#allocation2 + $0x98] sm:$0xff]
    %v43 = vld [vmem:[#allocation2 + $0xa0] sm:$0xff]
    %v44 = vld [vmem:[#allocation2 + $0xa8] sm:$0xff]
    %v45 = vld [vmem:[#allocation2 + $0xb0] sm:$0xff]
    %v46 = vld [vmem:[#allocation2 + $0xb8] sm:$0xff]
    %v47 = vld [vmem:[#allocation2 + $0xc0] sm:$0xff]
    %v48 = vld [vmem:[#allocation2 + $0xc8] sm:$0xff]
    %v49 = vld [vmem:[#allocation2 + $0xd0] sm:$0xff]
    %v50 = vld [vmem:[#allocation2 + $0xd8] sm:$0xff]
    %v51 = vld [vmem:[#allocation2 + $0xe0] sm:$0xff]
    %v52 = vld [vmem:[#allocation2 + $0xe8] sm:$0xff]
    %v53 = vld [vmem:[#allocation2 + $0xf0] sm:$0xff]
    %v54 = vld [vmem:[#allocation2 + $0xf8] sm:$0xff]
    %v55 = vld [vmem:[#allocation2 + $0x100] sm:$0xff]
    %v56 = vld [vmem:[#allocation2 + $0x108] sm:$0xff]
    %v57 = vld [vmem:[#allocation2 + $0x110] sm:$0xff]
    %v58 = vld [vmem:[#allocation2 + $0x118] sm:$0xff]
    %v59 = vld [vmem:[#allocation2 + $0x120] sm:$0xff]
    %v60 = vld [vmem:[#allocation2 + $0x128] sm:$0xff]
    %v61 = vld [vmem:[#allocation2 + $0x130] sm:$0xff]
    %v62 = vld [vmem:[#allocation2 + $0x138] sm:$0xff]
    %v63 = vld [vmem:[#allocation2 + $0x140] sm:$0xff]
    %v64 = vld [vmem:[#allocation2 + $0x148] sm:$0xff]
    %v65 = vld [vmem:[#allocation2 + $0x150] sm:$0xff]
    %v66 = vld [vmem:[#allocation2 + $0x158] sm:$0xff]
    %v67 = vld [vmem:[#allocation2 + $0x160] sm:$0xff]
    %v68 = vld [vmem:[#allocation2 + $0x168] sm:$0xff]
    %v69 = vld [vmem:[#allocation2 + $0x170] sm:$0xff]
    %v70 = vld [vmem:[#allocation2 + $0x178] sm:$0xff]
    %v71 = vld [vmem:[#allocation2 + $0x180] sm:$0xff]
    %v72 = vld [vmem:[#allocation2 + $0x188] sm:$0xff]
    %v73 = vld [vmem:[#allocation2 + $0x190] sm:$0xff]
    %v74 = vld [vmem:[#allocation2 + $0x198] sm:$0xff]
    %v75 = vld [vmem:[#allocation2 + $0x1a0] sm:$0xff]
    %v76 = vld [vmem:[#allocation2 + $0x1a8] sm:$0xff]
    %v77 = vld [vmem:[#allocation2 + $0x1b0] sm:$0xff]
    %v78 = vld [vmem:[#allocation2 + $0x1b8] sm:$0xff]
    %v79 = vld [vmem:[#allocation2 + $0x1c0] sm:$0xff]
    %v80 = vld [vmem:[#allocation2 + $0x1c8] sm:$0xff]
    %v81 = vld [vmem:[#allocation2 + $0x1d0] sm:$0xff]
    %v82 = vld [vmem:[#allocation2 + $0x1d8] sm:$0xff]
    %v83 = vld [vmem:[#allocation2 + $0x1e0] sm:$0xff]
    %v84 = vld [vmem:[#allocation2 + $0x1e8] sm:$0xff]
    %v85 = vld [vmem:[#allocation2 + $0x1f0] sm:$0xff]
    %v86 = vld [vmem:[#allocation2 + $0x1f8] sm:$0xff]
    %v87 = vmul.f32 %v23, 0.0078125
    %v88 = vmul.f32 %v24, 0.0078125
    %v89 = vmul.f32 %v25, 0.0078125
    %v90 = vmul.f32 %v26, 0.0078125
    %v91 = vmul.f32 %v27, 0.0078125
    %v92 = vmul.f32 %v28, 0.0078125
    %v93 = vmul.f32 %v29, 0.0078125
    %v94 = vmul.f32 %v30, 0.0078125
    %v95 = vmul.f32 %v31, 0.0078125
    %v96 = vmul.f32 %v32, 0.0078125
    %v97 = vmul.f32 %v33, 0.0078125
    %v98 = vmul.f32 %v34, 0.0078125
    %v99 = vmul.f32 %v35, 0.0078125
    %v100 = vmul.f32 %v36, 0.0078125
    %v101 = vmul.f32 %v37, 0.0078125
    %v102 = vmul.f32 %v38, 0.0078125
    %v103 = vmul.f32 %v39, 0.0078125
    %v104 = vmul.f32 %v40, 0.0078125
    %v105 = vmul.f32 %v41, 0.0078125
    %v106 = vmul.f32 %v42, 0.0078125
    %v107 = vmul.f32 %v43, 0.0078125
    %v108 = vmul.f32 %v44, 0.0078125
    %v109 = vmul.f32 %v45, 0.0078125
    %v110 = vmul.f32 %v46, 0.0078125
    %v111 = vmul.f32 %v47, 0.0078125
    %v112 = vmul.f32 %v48, 0.0078125
    %v113 = vmul.f32 %v49, 0.0078125
    %v114 = vmul.f32 %v50, 0.0078125
    %v115 = vmul.f32 %v51, 0.0078125
    %v116 = vmul.f32 %v52, 0.0078125
    %v117 = vmul.f32 %v53, 0.0078125
    %v118 = vmul.f32 %v54, 0.0078125
    %v119 = vmul.f32 %v55, 0.0078125
    %v120 = vmul.f32 %v56, 0.0078125
    %v121 = vmul.f32 %v57, 0.0078125
    %v122 = vmul.f32 %v58, 0.0078125
    %v123 = vmul.f32 %v59, 0.0078125
    %v124 = vmul.f32 %v60, 0.0078125
    %v125 = vmul.f32 %v61, 0.0078125
    %v126 = vmul.f32 %v62, 0.0078125
    %v127 = vmul.f32 %v63, 0.0078125
    %v128 = vmul.f32 %v64, 0.0078125
    %v129 = vmul.f32 %v65, 0.0078125
    %v130 = vmul.f32 %v66, 0.0078125
    %v131 = vmul.f32 %v67, 0.0078125
    %v132 = vmul.f32 %v68, 0.0078125
    %v133 = vmul.f32 %v69, 0.0078125
    %v134 = vmul.f32 %v70, 0.0078125
    %v135 = vmul.f32 %v71, 0.0078125
    %v136 = vmul.f32 %v72, 0.0078125
    %v137 = vmul.f32 %v73, 0.0078125
    %v138 = vmul.f32 %v74, 0.0078125
    %v139 = vmul.f32 %v75, 0.0078125
    %v140 = vmul.f32 %v76, 0.0078125
    %v141 = vmul.f32 %v77, 0.0078125
    %v142 = vmul.f32 %v78, 0.0078125
    %v143 = vmul.f32 %v79, 0.0078125
    %v144 = vmul.f32 %v80, 0.0078125
    %v145 = vmul.f32 %v81, 0.0078125
    %v146 = vmul.f32 %v82, 0.0078125
    %v147 = vmul.f32 %v83, 0.0078125
    %v148 = vmul.f32 %v84, 0.0078125
    %v149 = vmul.f32 %v85, 0.0078125
    %v150 = vmul.f32 %v86, 0.0078125
    %v151 = vadd.f32 %v87, -0.99609375
    %v152 = vadd.f32 %v88, -0.99609375
    %v153 = vadd.f32 %v89, -0.99609375
    %v154 = vadd.f32 %v90, -0.99609375
    %v155 = vadd.f32 %v91, -0.99609375
    %v156 = vadd.f32 %v92, -0.99609375
    %v157 = vadd.f32 %v93, -0.99609375
    %v158 = vadd.f32 %v94, -0.99609375
    %v159 = vadd.f32 %v95, -0.99609375
    %v160 = vadd.f32 %v96, -0.99609375
    %v161 = vadd.f32 %v97, -0.99609375
    %v162 = vadd.f32 %v98, -0.99609375
    %v163 = vadd.f32 %v99, -0.99609375
    %v164 = vadd.f32 %v100, -0.99609375
    %v165 = vadd.f32 %v101, -0.99609375
    %v166 = vadd.f32 %v102, -0.99609375
    %v167 = vadd.f32 %v103, -0.99609375
    %v168 = vadd.f32 %v104, -0.99609375
    %v169 = vadd.f32 %v105, -0.99609375
    %v170 = vadd.f32 %v106, -0.99609375
    %v171 = vadd.f32 %v107, -0.99609375
    %v172 = vadd.f32 %v108, -0.99609375
    %v173 = vadd.f32 %v109, -0.99609375
    %v174 = vadd.f32 %v110, -0.99609375
    %v175 = vadd.f32 %v111, -0.99609375
    %v176 = vadd.f32 %v112, -0.99609375
    %v177 = vadd.f32 %v113, -0.99609375
    %v178 = vadd.f32 %v114, -0.99609375
    %v179 = vadd.f32 %v115, -0.99609375
    %v180 = vadd.f32 %v116, -0.99609375
    %v181 = vadd.f32 %v117, -0.99609375
    %v182 = vadd.f32 %v118, -0.99609375
    %v183 = vadd.f32 %v119, -0.99609375
    %v184 = vadd.f32 %v120, -0.99609375
    %v185 = vadd.f32 %v121, -0.99609375
    %v186 = vadd.f32 %v122, -0.99609375
    %v187 = vadd.f32 %v123, -0.99609375
    %v188 = vadd.f32 %v124, -0.99609375
    %v189 = vadd.f32 %v125, -0.99609375
    %v190 = vadd.f32 %v126, -0.99609375
    %v191 = vadd.f32 %v127, -0.99609375
    %v192 = vadd.f32 %v128, -0.99609375
    %v193 = vadd.f32 %v129, -0.99609375
    %v194 = vadd.f32 %v130, -0.99609375
    %v195 = vadd.f32 %v131, -0.99609375
    %v196 = vadd.f32 %v132, -0.99609375
    %v197 = vadd.f32 %v133, -0.99609375
    %v198 = vadd.f32 %v134, -0.99609375
    %v199 = vadd.f32 %v135, -0.99609375
    %v200 = vadd.f32 %v136, -0.99609375
    %v201 = vadd.f32 %v137, -0.99609375
    %v202 = vadd.f32 %v138, -0.99609375
    %v203 = vadd.f32 %v139, -0.99609375
    %v204 = vadd.f32 %v140, -0.99609375
    %v205 = vadd.f32 %v141, -0.99609375
    %v206 = vadd.f32 %v142, -0.99609375
    %v207 = vadd.f32 %v143, -0.99609375
    %v208 = vadd.f32 %v144, -0.99609375
    %v209 = vadd.f32 %v145, -0.99609375
    %v210 = vadd.f32 %v146, -0.99609375
    %v211 = vadd.f32 %v147, -0.99609375
    %v212 = vadd.f32 %v148, -0.99609375
    %v213 = vadd.f32 %v149, -0.99609375
    %v214 = vadd.f32 %v150, -0.99609375
    %v215 = vmax.f32 %v151, -1.0
    %v216 = vmax.f32 %v152, -1.0
    %v217 = vmax.f32 %v153, -1.0
    %v218 = vmax.f32 %v154, -1.0
    %v219 = vmax.f32 %v155, -1.0
    %v220 = vmax.f32 %v156, -1.0
    %v221 = vmax.f32 %v157, -1.0
    %v222 = vmax.f32 %v158, -1.0
    %v223 = vmax.f32 %v159, -1.0
    %v224 = vmax.f32 %v160, -1.0
    %v225 = vmax.f32 %v161, -1.0
    %v226 = vmax.f32 %v162, -1.0
    %v227 = vmax.f32 %v163, -1.0
    %v228 = vmax.f32 %v164, -1.0
    %v229 = vmax.f32 %v165, -1.0
    %v230 = vmax.f32 %v166, -1.0
    %v231 = vmax.f32 %v167, -1.0
    %v232 = vmax.f32 %v168, -1.0
    %v233 = vmax.f32 %v169, -1.0
    %v234 = vmax.f32 %v170, -1.0
    %v235 = vmax.f32 %v171, -1.0
    %v236 = vmax.f32 %v172, -1.0
    %v237 = vmax.f32 %v173, -1.0
    %v238 = vmax.f32 %v174, -1.0
    %v239 = vmax.f32 %v175, -1.0
    %v240 = vmax.f32 %v176, -1.0
    %v241 = vmax.f32 %v177, -1.0
    %v242 = vmax.f32 %v178, -1.0
    %v243 = vmax.f32 %v179, -1.0
    %v244 = vmax.f32 %v180, -1.0
    %v245 = vmax.f32 %v181, -1.0
    %v246 = vmax.f32 %v182, -1.0
    %v247 = vmax.f32 %v183, -1.0
    %v248 = vmax.f32 %v184, -1.0
    %v249 = vmax.f32 %v185, -1.0
    %v250 = vmax.f32 %v186, -1.0
    %v251 = vmax.f32 %v187, -1.0
    %v252 = vmax.f32 %v188, -1.0
    %v253 = vmax.f32 %v189, -1.0
    %v254 = vmax.f32 %v190, -1.0
    %v255 = vmax.f32 %v191, -1.0
    %v256 = vmax.f32 %v192, -1.0
    %v257 = vmax.f32 %v193, -1.0
    %v258 = vmax.f32 %v194, -1.0
    %v259 = vmax.f32 %v195, -1.0
    %v260 = vmax.f32 %v196, -1.0
    %v261 = vmax.f32 %v197, -1.0
    %v262 = vmax.f32 %v198, -1.0
    %v263 = vmax.f32 %v199, -1.0
    %v264 = vmax.f32 %v200, -1.0
    %v265 = vmax.f32 %v201, -1.0
    %v266 = vmax.f32 %v202, -1.0
    %v267 = vmax.f32 %v203, -1.0
    %v268 = vmax.f32 %v204, -1.0
    %v269 = vmax.f32 %v205, -1.0
    %v270 = vmax.f32 %v206, -1.0
    %v271 = vmax.f32 %v207, -1.0
    %v272 = vmax.f32 %v208, -1.0
    %v273 = vmax.f32 %v209, -1.0
    %v274 = vmax.f32 %v210, -1.0
    %v275 = vmax.f32 %v211, -1.0
    %v276 = vmax.f32 %v212, -1.0
    %v277 = vmax.f32 %v213, -1.0
    %v278 = vmax.f32 %v214, -1.0
    %v279 = vmin.f32 %v215, 1.0
    %v280 = vmin.f32 %v216, 1.0
    %v281 = vmin.f32 %v217, 1.0
    %v282 = vmin.f32 %v218, 1.0
    %v283 = vmin.f32 %v219, 1.0
    %v284 = vmin.f32 %v220, 1.0
    %v285 = vmin.f32 %v221, 1.0
    %v286 = vmin.f32 %v222, 1.0
    %v287 = vmin.f32 %v223, 1.0
    %v288 = vmin.f32 %v224, 1.0
    %v289 = vmin.f32 %v225, 1.0
    %v290 = vmin.f32 %v226, 1.0
    %v291 = vmin.f32 %v227, 1.0
    %v292 = vmin.f32 %v228, 1.0
    %v293 = vmin.f32 %v229, 1.0
    %v294 = vmin.f32 %v230, 1.0
    %v295 = vmin.f32 %v231, 1.0
    %v296 = vmin.f32 %v232, 1.0
    %v297 = vmin.f32 %v233, 1.0
    %v298 = vmin.f32 %v234, 1.0
    %v299 = vmin.f32 %v235, 1.0
    %v300 = vmin.f32 %v236, 1.0
    %v301 = vmin.f32 %v237, 1.0
    %v302 = vmin.f32 %v238, 1.0
    %v303 = vmin.f32 %v239, 1.0
    %v304 = vmin.f32 %v240, 1.0
    %v305 = vmin.f32 %v241, 1.0
    %v306 = vmin.f32 %v242, 1.0
    %v307 = vmin.f32 %v243, 1.0
    %v308 = vmin.f32 %v244, 1.0
    %v309 = vmin.f32 %v245, 1.0
    %v310 = vmin.f32 %v246, 1.0
    %v311 = vmin.f32 %v247, 1.0
    %v312 = vmin.f32 %v248, 1.0
    %v313 = vmin.f32 %v249, 1.0
    %v314 = vmin.f32 %v250, 1.0
    %v315 = vmin.f32 %v251, 1.0
    %v316 = vmin.f32 %v252, 1.0
    %v317 = vmin.f32 %v253, 1.0
    %v318 = vmin.f32 %v254, 1.0
    %v319 = vmin.f32 %v255, 1.0
    %v320 = vmin.f32 %v256, 1.0
    %v321 = vmin.f32 %v257, 1.0
    %v322 = vmin.f32 %v258, 1.0
    %v323 = vmin.f32 %v259, 1.0
    %v324 = vmin.f32 %v260, 1.0
    %v325 = vmin.f32 %v261, 1.0
    %v326 = vmin.f32 %v262, 1.0
    %v327 = vmin.f32 %v263, 1.0
    %v328 = vmin.f32 %v264, 1.0
    %v329 = vmin.f32 %v265, 1.0
    %v330 = vmin.f32 %v266, 1.0
    %v331 = vmin.f32 %v267, 1.0
    %v332 = vmin.f32 %v268, 1.0
    %v333 = vmin.f32 %v269, 1.0
    %v334 = vmin.f32 %v270, 1.0
    %v335 = vmin.f32 %v271, 1.0
    %v336 = vmin.f32 %v272, 1.0
    %v337 = vmin.f32 %v273, 1.0
    %v338 = vmin.f32 %v274, 1.0
    %v339 = vmin.f32 %v275, 1.0
    %v340 = vmin.f32 %v276, 1.0
    %v341 = vmin.f32 %v277, 1.0
    %v342 = vmin.f32 %v278, 1.0
    %343 = vst [vmem:[#allocation5] sm:$0xff] %v279
    %344 = vst [vmem:[#allocation5 + $0x8] sm:$0xff] %v280
    %345 = vst [vmem:[#allocation5 + $0x10] sm:$0xff] %v281
    %346 = vst [vmem:[#allocation5 + $0x18] sm:$0xff] %v282
    %347 = vst [vmem:[#allocation5 + $0x20] sm:$0xff] %v283
    %348 = vst [vmem:[#allocation5 + $0x28] sm:$0xff] %v284
    %349 = vst [vmem:[#allocation5 + $0x30] sm:$0xff] %v285
    %350 = vst [vmem:[#allocation5 + $0x38] sm:$0xff] %v286
    %351 = vst [vmem:[#allocation5 + $0x40] sm:$0xff] %v287
    %352 = vst [vmem:[#allocation5 + $0x48] sm:$0xff] %v288
    %353 = vst [vmem:[#allocation5 + $0x50] sm:$0xff] %v289
    %354 = vst [vmem:[#allocation5 + $0x58] sm:$0xff] %v290
    %355 = vst [vmem:[#allocation5 + $0x60] sm:$0xff] %v291
    %356 = vst [vmem:[#allocation5 + $0x68] sm:$0xff] %v292
    %357 = vst [vmem:[#allocation5 + $0x70] sm:$0xff] %v293
    %358 = vst [vmem:[#allocation5 + $0x78] sm:$0xff] %v294
    %359 = vst [vmem:[#allocation5 + $0x80] sm:$0xff] %v295
    %360 = vst [vmem:[#allocation5 + $0x88] sm:$0xff] %v296
    %361 = vst [vmem:[#allocation5 + $0x90] sm:$0xff] %v297
    %362 = vst [vmem:[#allocation5 + $0x98] sm:$0xff] %v298
    %363 = vst [vmem:[#allocation5 + $0xa0] sm:$0xff] %v299
    %364 = vst [vmem:[#allocation5 + $0xa8] sm:$0xff] %v300
    %365 = vst [vmem:[#allocation5 + $0xb0] sm:$0xff] %v301
    %366 = vst [vmem:[#allocation5 + $0xb8] sm:$0xff] %v302
    %367 = vst [vmem:[#allocation5 + $0xc0] sm:$0xff] %v303
    %368 = vst [vmem:[#allocation5 + $0xc8] sm:$0xff] %v304
    %369 = vst [vmem:[#allocation5 + $0xd0] sm:$0xff] %v305
    %370 = vst [vmem:[#allocation5 + $0xd8] sm:$0xff] %v306
    %371 = vst [vmem:[#allocation5 + $0xe0] sm:$0xff] %v307
    %372 = vst [vmem:[#allocation5 + $0xe8] sm:$0xff] %v308
    %373 = vst [vmem:[#allocation5 + $0xf0] sm:$0xff] %v309
    %374 = vst [vmem:[#allocation5 + $0xf8] sm:$0xff] %v310
    %375 = vst [vmem:[#allocation5 + $0x100] sm:$0xff] %v311
    %376 = vst [vmem:[#allocation5 + $0x108] sm:$0xff] %v312
    %377 = vst [vmem:[#allocation5 + $0x110] sm:$0xff] %v313
    %378 = vst [vmem:[#allocation5 + $0x118] sm:$0xff] %v314
    %379 = vst [vmem:[#allocation5 + $0x120] sm:$0xff] %v315
    %380 = vst [vmem:[#allocation5 + $0x128] sm:$0xff] %v316
    %381 = vst [vmem:[#allocation5 + $0x130] sm:$0xff] %v317
    %382 = vst [vmem:[#allocation5 + $0x138] sm:$0xff] %v318
    %383 = vst [vmem:[#allocation5 + $0x140] sm:$0xff] %v319
    %384 = vst [vmem:[#allocation5 + $0x148] sm:$0xff] %v320
    %385 = vst [vmem:[#allocation5 + $0x150] sm:$0xff] %v321
    %386 = vst [vmem:[#allocation5 + $0x158] sm:$0xff] %v322
    %387 = vst [vmem:[#allocation5 + $0x160] sm:$0xff] %v323
    %388 = vst [vmem:[#allocation5 + $0x168] sm:$0xff] %v324
    %389 = vst [vmem:[#allocation5 + $0x170] sm:$0xff] %v325
    %390 = vst [vmem:[#allocation5 + $0x178] sm:$0xff] %v326
    %391 = vst [vmem:[#allocation5 + $0x180] sm:$0xff] %v327
    %392 = vst [vmem:[#allocation5 + $0x188] sm:$0xff] %v328
    %393 = vst [vmem:[#allocation5 + $0x190] sm:$0xff] %v329
    %394 = vst [vmem:[#allocation5 + $0x198] sm:$0xff] %v330
    %395 = vst [vmem:[#allocation5 + $0x1a0] sm:$0xff] %v331
    %396 = vst [vmem:[#allocation5 + $0x1a8] sm:$0xff] %v332
    %397 = vst [vmem:[#allocation5 + $0x1b0] sm:$0xff] %v333
    %398 = vst [vmem:[#allocation5 + $0x1b8] sm:$0xff] %v334
    %399 = vst [vmem:[#allocation5 + $0x1c0] sm:$0xff] %v335
    %400 = vst [vmem:[#allocation5 + $0x1c8] sm:$0xff] %v336
    %401 = vst [vmem:[#allocation5 + $0x1d0] sm:$0xff] %v337
    %402 = vst [vmem:[#allocation5 + $0x1d8] sm:$0xff] %v338
    %403 = vst [vmem:[#allocation5 + $0x1e0] sm:$0xff] %v339
    %404 = vst [vmem:[#allocation5 + $0x1e8] sm:$0xff] %v340
    %405 = vst [vmem:[#allocation5 + $0x1f0] sm:$0xff] %v341
    %406 = vst [vmem:[#allocation5 + $0x1f8] sm:$0xff] %v342
    // Predicated region
    $region10: #{tpu_custom_call.1} parent=1 // pred_check
      _
    $region11: #{tpu_custom_call.1} parent=1 // pred_check_branch
      %408 = sbr.rel (0) target = $region13
    $region12: #{tpu_custom_call.1} parent=1 // pred_region
      %s410 = ssub.s32 8192, 256
      %411 = vsyncadd [#allocation4], %s410
      %s412 = sshll.u32 [#allocation5], 4
      %s413 = int_to_ptr.vmem [resolvable:$true] %s412
      %418 = dma.vmem_to_hbm [thread:$0]  %s413, 256, %s1, [#allocation4], 256, 256, 16
    $region13: #{tpu_custom_call.1} parent=1 // pred_fallthru
      _
    // Predicated region
    $region14: #{tpu_custom_call.1} parent=1 // pred_check
      _
    $region15: #{tpu_custom_call.1} parent=1 // pred_check_branch
      %420 = sbr.rel (0) target = $region17
    $region16: #{tpu_custom_call.1} parent=1 // pred_region
      %421 = dma.done [#allocation4], 8192
    $region17: #{tpu_custom_call.1} parent=1 // pred_fallthru
      _
    %422 = vsyncpa [#allocation3], 1
    %423 = vsyncpa [#allocation4], 1

</llo_original>
